<compile_context>
chip_gen: v5e
topology: v5e:2x2
jax: 0.10.0
libtpu: 0.0.40
codegen_flags: <defaults>
</compile_context>

<pallas_src>
import functools

import jax
import jax.numpy as jnp
from jax import lax
from jax.experimental import pallas as pl
from jax.experimental.pallas import tpu as pltpu


# ----------------------------------------------------------------------------
# In-kernel building blocks
# ----------------------------------------------------------------------------
def _conv_rows(x_ref, a_ref, b_ref, *, kh, stride, Ho):
    """Convolution for one image -> f32 [Ho, Wo*Cout].

    x_ref: [1, Hpad, Wpad*Cin]  (bf16) padded NHWC rows, W and C flattened
    a_ref: [kh, Wpad*Cin, Wo*Cout] (bf16) horizontally-unrolled weights
    b_ref: [1, Wo*Cout] (f32) bias tiled per output column
    """
    x = x_ref[0]                                  # [Hpad, Wpad*Cin]
    hfull = x.shape[0] - kh + 1                   # stride-1 output row count
    acc = None
    for di in range(kh):
        part = jnp.dot(x[di:di + hfull, :], a_ref[di],
                       preferred_element_type=jnp.float32)
        acc = part if acc is None else acc + part
    if stride > 1:
        # Select rows ho*stride via a tiny 0/1 matmul (avoids strided slices).
        r = lax.broadcasted_iota(jnp.int32, (Ho, hfull), 1)
        s = lax.broadcasted_iota(jnp.int32, (Ho, hfull), 0) * stride
        acc = jnp.dot((r == s).astype(acc.dtype), acc,
                      preferred_element_type=jnp.float32)
    return acc + b_ref[...]                       # [Ho, Wo*Cout] f32


def _pool_s2(acc, s_ref, t_ref, *, k, cout, wo):
    """k x k / stride-2 max-pool of one [Ho, Wo*Cout] tile -> [Hp, Wp*Cout].

    s_ref: [Hp, Ho-k+1]           0/1 row-decimation matrix
    t_ref: [(Wo-k+1)*Cout, Wp*Cout] 0/1 column-decimation matrix
    """
    ho = acc.shape[0]
    hv, wv = ho - k + 1, wo - k + 1
    win = None
    for di in range(k):
        for dj in range(k):
            t = acc[di:di + hv, dj * cout:(dj + wv) * cout]
            win = t if win is None else jnp.maximum(win, t)
    win = jnp.dot(s_ref[...], win, preferred_element_type=jnp.float32)
    return jnp.dot(win, t_ref[...], preferred_element_type=jnp.float32)


# ----------------------------------------------------------------------------
# Pallas kernels
# ----------------------------------------------------------------------------
def _conv_fused_kernel(x_ref, a_ref, b_ref, out_ref, *, kh, stride, Ho, relu):
    acc = _conv_rows(x_ref, a_ref, b_ref, kh=kh, stride=stride, Ho=Ho)
    if relu:
        acc = jnp.maximum(acc, 0.0)
    out_ref[...] = acc.astype(out_ref.dtype)


def _conv_fused_pool_kernel(x_ref, a_ref, b_ref, s_ref, t_ref, out_ref,
                            *, kh, stride, Ho, Wo, Cout, relu, pool_k):
    acc = _conv_rows(x_ref, a_ref, b_ref, kh=kh, stride=stride, Ho=Ho)
    if relu:
        acc = jnp.maximum(acc, 0.0)
    pooled = _pool_s2(acc, s_ref, t_ref, k=pool_k, cout=Cout, wo=Wo)
    out_ref[...] = pooled.astype(out_ref.dtype)


def _conv_stats_kernel(x_ref, a_ref, b_ref, y_ref, s_ref, ss_ref,
                       *, kh, stride, Ho):
    """BN pass 1: conv + bias, plus per-image channel sum / sum-of-squares."""
    acc = _conv_rows(x_ref, a_ref, b_ref, kh=kh, stride=stride, Ho=Ho)
    y_ref[...] = acc.astype(y_ref.dtype)
    s_ref[0] = jnp.sum(acc, axis=0, keepdims=True)
    ss_ref[0] = jnp.sum(acc * acc, axis=0, keepdims=True)


def _affine_kernel(y_ref, sc_ref, sh_ref, out_ref, *, relu):
    """BN pass 2 (no pooling): y*scale + shift (+ReLU)."""
    acc = y_ref[...] * sc_ref[...] + sh_ref[...]
    if relu:
        acc = jnp.maximum(acc, 0.0)
    out_ref[...] = acc.astype(out_ref.dtype)


def _affine_pool_kernel(y_ref, sc_ref, sh_ref, s_ref, t_ref, out_ref,
                        *, relu, pool_k, Cout, Wo):
    """BN pass 2: y*scale + shift (+ReLU) + max-pool, fully fused."""
    acc = y_ref[...] * sc_ref[...] + sh_ref[...]
    if relu:
        acc = jnp.maximum(acc, 0.0)
    pooled = _pool_s2(acc, s_ref, t_ref, k=pool_k, cout=Cout, wo=Wo)
    out_ref[...] = pooled.astype(out_ref.dtype)


# ----------------------------------------------------------------------------
# Wrapper (forward pass of blockCNN)
# ----------------------------------------------------------------------------
def block_cnn_forward(x, params, *, kernel_size, padding, stride=1,
                      use_bn=False, use_relu=False, use_maxpool=False,
                      maxpool_kernelsize=None, eps=1e-5):
    w, b, gamma, beta = params["w"], params["b"], params["gamma"], params["beta"]
    N, Cin, H, W = x.shape
    Cout, _, kh, kw = w.shape
    assert kh == kernel_size and kw == kernel_size
    Hpad, Wpad = H + 2 * padding, W + 2 * padding
    Ho = (Hpad - kh) // stride + 1
    Wo = (Wpad - kw) // stride + 1
    WoC = Wo * Cout

    # ---- glue: layout / parameter prep (1x pass over input + O(params)) ----
    xp = jnp.pad(x, ((0, 0), (0, 0), (padding, padding), (padding, padding)))
    x2 = xp.transpose(0, 2, 3, 1).reshape(N, Hpad, Wpad * Cin).astype(jnp.bfloat16)

    # Horizontally-unrolled weights:
    #   A[di, wcol*Cin + c, wo*Cout + o] = w[o, c, di, wcol - wo*stride]
    wcol = jnp.arange(Wpad)[:, None]
    wo_i = jnp.arange(Wo)[None, :]
    djm = wcol - wo_i * stride
    valid = (djm >= 0) & (djm < kw)
    wt = w.transpose(2, 3, 1, 0)                        # [kh, kw, Cin, Cout]
    A = wt[:, jnp.clip(djm, 0, kw - 1)]                 # [kh, Wpad, Wo, Cin, Cout]
    A = jnp.where(valid[None, :, :, None, None], A, 0.0)
    A = A.transpose(0, 1, 3, 2, 4).reshape(kh, Wpad * Cin, WoC).astype(jnp.bfloat16)

    b_t = jnp.tile(b, Wo).reshape(1, WoC).astype(jnp.float32)

    grid = (N,)
    cparams = pltpu.CompilerParams(
        dimension_semantics=("parallel",),
        vmem_limit_bytes=32 * 1024 * 1024)

    x_spec = pl.BlockSpec((1, Hpad, Wpad * Cin), lambda n: (n, 0, 0))
    a_spec = pl.BlockSpec((kh, Wpad * Cin, WoC), lambda n: (0, 0, 0))
    row_spec = pl.BlockSpec((1, WoC), lambda n: (0, 0))
    y_spec = pl.BlockSpec((Ho, WoC), lambda n: (n, 0))

    conv_flops = 2 * N * kh * (Hpad - kh + 1) * (Wpad * Cin) * WoC
    conv_bytes = int(x2.size) * 2 + int(A.size) * 2 + N * Ho * WoC * 4
    conv_cost = pl.CostEstimate(flops=conv_flops, transcendentals=0,
                                bytes_accessed=conv_bytes)

    if use_maxpool:
        assert maxpool_kernelsize is not None and maxpool_kernelsize >= 2
        k = maxpool_kernelsize
        ps = 2                                          # F.max_pool2d(..., stride=2)
        Hp = (Ho - k) // ps + 1
        Wp = (Wo - k) // ps + 1
        Hv, Wv = Ho - k + 1, Wo - k + 1
        # 0/1 decimation matrices (host-built so the kernel needs no strided
        # slices or vector integer div/mod).
        S_dec = (jnp.arange(Hv)[None, :] == 2 * jnp.arange(Hp)[:, None]
                 ).astype(jnp.float32)
        c1 = jnp.arange(Wv * Cout)[:, None]
        c2 = jnp.arange(Wp * Cout)[None, :]
        T_dec = (((c1 // Cout) == 2 * (c2 // Cout)) &
                 ((c1 % Cout) == (c2 % Cout))).astype(jnp.float32)
        s_spec = pl.BlockSpec((Hp, Hv), lambda n: (0, 0))
        t_spec = pl.BlockSpec((Wv * Cout, Wp * Cout), lambda n: (0, 0))
        out_struct = jax.ShapeDtypeStruct((N * Hp, Wp * Cout), jnp.float32)
        out_spec = pl.BlockSpec((Hp, Wp * Cout), lambda n: (n, 0))

    # ------------------------------------------------------------------ no BN
    if not use_bn:
        if use_maxpool:
            kern = functools.partial(_conv_fused_pool_kernel, kh=kh, stride=stride,
                                     Ho=Ho, Wo=Wo, Cout=Cout, relu=use_relu,
                                     pool_k=k)
            out = pl.pallas_call(
                kern, out_shape=out_struct, grid=grid,
                in_specs=[x_spec, a_spec, row_spec, s_spec, t_spec],
                out_specs=out_spec, compiler_params=cparams,
                cost_estimate=conv_cost,
            )(x2, A, b_t, S_dec, T_dec)
            return out.reshape(N, Hp, Wp, Cout).transpose(0, 3, 1, 2)

        kern = functools.partial(_conv_fused_kernel, kh=kh, stride=stride, Ho=Ho,
                                 relu=use_relu)
        y = pl.pallas_call(
            kern, out_shape=jax.ShapeDtypeStruct((N * Ho, WoC), jnp.float32),
            grid=grid, in_specs=[x_spec, a_spec, row_spec], out_specs=y_spec,
            compiler_params=cparams, cost_estimate=conv_cost,
        )(x2, A, b_t)
        return y.reshape(N, Ho, Wo, Cout).transpose(0, 3, 1, 2)

    # ------------------------------------------------------------------ BN
    # Pass 1: conv + bias, with per-image per-channel partial statistics.
    kern1 = functools.partial(_conv_stats_kernel, kh=kh, stride=stride, Ho=Ho)
    y, psum, psumsq = pl.pallas_call(
        kern1,
        out_shape=(jax.ShapeDtypeStruct((N * Ho, WoC), jnp.float32),
                   jax.ShapeDtypeStruct((N, 1, WoC), jnp.float32),
                   jax.ShapeDtypeStruct((N, 1, WoC), jnp.float32)),
        grid=grid,
        in_specs=[x_spec, a_spec, row_spec],
        out_specs=(y_spec,
                   pl.BlockSpec((1, 1, WoC), lambda n: (n, 0, 0)),
                   pl.BlockSpec((1, 1, WoC), lambda n: (n, 0, 0))),
        compiler_params=cparams, cost_estimate=conv_cost,
    )(x2, A, b_t)

    # Tiny O(Cout) glue: finish training-mode batch statistics (biased var).
    cnt = N * Ho * Wo
    ch_sum = psum.reshape(N, Wo, Cout).sum(axis=(0, 1))
    ch_sq = psumsq.reshape(N, Wo, Cout).sum(axis=(0, 1))
    mean = ch_sum / cnt
    var = ch_sq / cnt - mean * mean
    scale_c = gamma * lax.rsqrt(var + eps)
    shift_c = beta - mean * scale_c
    scale_t = jnp.tile(scale_c, Wo).reshape(1, WoC).astype(jnp.float32)
    shift_t = jnp.tile(shift_c, Wo).reshape(1, WoC).astype(jnp.float32)
    # TODO(synk): running_mean/running_var buffer updates (training-side state
    # mutation) are not materialized; only the forward normalization is computed.

    # Pass 2: affine + ReLU (+ max-pool), fused.
    if use_maxpool:
        kern2 = functools.partial(_affine_pool_kernel, relu=use_relu, pool_k=k,
                                  Cout=Cout, Wo=Wo)
        out = pl.pallas_call(
            kern2, out_shape=out_struct, grid=grid,
            in_specs=[y_spec, row_spec, row_spec, s_spec, t_spec],
            out_specs=out_spec, compiler_params=cparams,
        )(y, scale_t, shift_t, S_dec, T_dec)
        return out.reshape(N, Hp, Wp, Cout).transpose(0, 3, 1, 2)

    kern2 = functools.partial(_affine_kernel, relu=use_relu)
    out = pl.pallas_call(
        kern2, out_shape=jax.ShapeDtypeStruct((N * Ho, WoC), jnp.float32),
        grid=grid, in_specs=[y_spec, row_spec, row_spec], out_specs=y_spec,
        compiler_params=cparams,
    )(y, scale_t, shift_t)
    return out.reshape(N, Ho, Wo, Cout).transpose(0, 3, 1, 2)


# ----------------------------------------------------------------------------
# Pure-JAX reference (mirrors the PyTorch forward) for a correctness check
# ----------------------------------------------------------------------------
def reference_forward(x, params, *, kernel_size, padding, stride=1,
                      use_bn=False, use_relu=False, use_maxpool=False,
                      maxpool_kernelsize=None, eps=1e-5):
    w, b, gamma, beta = params["w"], params["b"], params["gamma"], params["beta"]
    y = lax.conv_general_dilated(
        x, w, window_strides=(stride, stride),
        padding=[(padding, padding), (padding, padding)],
        dimension_numbers=("NCHW", "OIHW", "NCHW"))
    y = y + b[None, :, None, None]
    if use_bn:
        mean = jnp.mean(y, axis=(0, 2, 3), keepdims=True)
        var = jnp.mean((y - mean) ** 2, axis=(0, 2, 3), keepdims=True)
        y = (y - mean) * lax.rsqrt(var + eps) * gamma[None, :, None, None] \
            + beta[None, :, None, None]
    if use_relu:
        y = jnp.maximum(y, 0.0)
    if use_maxpool:
        k = maxpool_kernelsize
        y = lax.reduce_window(y, -jnp.inf, lax.max,
                              (1, 1, k, k), (1, 1, 2, 2), "VALID")
    return y


# ----------------------------------------------------------------------------
# Main
# ----------------------------------------------------------------------------
if __name__ == "__main__":
    # Small shapes consistent with blockCNN: batch=2, in_nc=4, out_nc=8, 16x16.
    N, in_nc, out_nc, H, W = 2, 4, 8, 16, 16
    kernel_size, padding, stride = 3, 1, 1

    key = jax.random.PRNGKey(0)
    kw_, kb_, kg_, kbe_, kx_ = jax.random.split(key, 5)
    params = {
        "w": 0.1 * jax.random.normal(kw_, (out_nc, in_nc, kernel_size, kernel_size), jnp.float32),
        "b": 0.1 * jax.random.normal(kb_, (out_nc,), jnp.float32),
        "gamma": 1.0 + 0.1 * jax.random.normal(kg_, (out_nc,), jnp.float32),
        "beta": 0.1 * jax.random.normal(kbe_, (out_nc,), jnp.float32),
    }
    x = jax.random.normal(kx_, (N, in_nc, H, W), jnp.float32)

    configs = [
        dict(use_bn=False, use_relu=False, use_maxpool=False, maxpool_kernelsize=None),
        dict(use_bn=True, use_relu=True, use_maxpool=True, maxpool_kernelsize=2),
    ]

    for cfg in configs:
        out = block_cnn_forward(x, params, kernel_size=kernel_size,
                                padding=padding, stride=stride, **cfg)
        out = jax.block_until_ready(out)
        ref = reference_forward(x, params, kernel_size=kernel_size,
                                padding=padding, stride=stride, **cfg)
        assert out.shape == ref.shape, (out.shape, ref.shape)
        err = float(jnp.max(jnp.abs(out - ref)))
        # bf16 MXU inputs with f32 accumulation -> slightly looser tolerance.
        assert jnp.allclose(out, ref, atol=3e-2, rtol=3e-2), \
            f"mismatch for cfg={cfg}: max abs diff {err}"

    print("KERNEL_OK")
</pallas_src>

<mosaic_0001>
module attributes {stable_mosaic.version = 11 : i64} {
  func.func @_conv_fused_kernel(%arg0: i32, %arg1: memref<1x18x72xbf16, #tpu.memory_space<vmem>>, %arg2: memref<3x72x128xbf16, #tpu.memory_space<vmem>>, %arg3: memref<1x128xf32, #tpu.memory_space<vmem>>, %arg4: memref<16x128xf32, #tpu.memory_space<vmem>>) attributes {dimension_semantics = [#tpu.dimension_semantics<parallel>], iteration_bounds = array<i64: 2>, scalar_prefetch = 0 : i64, scratch_operands = 0 : i64, tpu.core_type = #tpu.core_type<tc>, window_params = [{transform_indices = @transform_0, window_bounds = array<i64: 1, 18, 72>}, {pipeline_mode = #tpu.pipeline_mode<synchronous>, transform_indices = @transform_1, window_bounds = array<i64: 3, 72, 128>}, {pipeline_mode = #tpu.pipeline_mode<synchronous>, transform_indices = @transform_2, window_bounds = array<i64: 1, 128>}, {transform_indices = @transform_3, window_bounds = array<i64: 16, 128>}]} {
    %c0 = arith.constant 0 : index
    %c0_0 = arith.constant 0 : index
    %c0_1 = arith.constant 0 : index
    %0 = vector.load %arg1[%c0, %c0_0, %c0_1] : memref<1x18x72xbf16, #tpu.memory_space<vmem>>, vector<1x18x72xbf16>
    %1 = vector.shape_cast %0 : vector<1x18x72xbf16> to vector<18x72xbf16>
    %2 = vector.extract_strided_slice %1 {offsets = [0, 0], sizes = [16, 72], strides = [1, 1]} : vector<18x72xbf16> to vector<16x72xbf16>
    %c0_2 = arith.constant 0 : index
    %c0_3 = arith.constant 0 : index
    %c0_4 = arith.constant 0 : index
    %3 = vector.load %arg2[%c0_2, %c0_3, %c0_4] : memref<3x72x128xbf16, #tpu.memory_space<vmem>>, vector<1x72x128xbf16>
    %4 = vector.shape_cast %3 : vector<1x72x128xbf16> to vector<72x128xbf16>
    %cst = arith.constant dense<0.000000e+00> : vector<16x128xf32>
    %5 = tpu.matmul %2, %4, %cst {dimension_numbers = #tpu.dot_dimension_numbers<[1], [0], [0], [1], [0, 0, 1, 1], [], []>} : vector<16x72xbf16>, vector<72x128xbf16>, vector<16x128xf32> -> vector<16x128xf32>
    %6 = vector.extract_strided_slice %1 {offsets = [1, 0], sizes = [16, 72], strides = [1, 1]} : vector<18x72xbf16> to vector<16x72xbf16>
    %c1 = arith.constant 1 : index
    %c0_5 = arith.constant 0 : index
    %c0_6 = arith.constant 0 : index
    %7 = vector.load %arg2[%c1, %c0_5, %c0_6] : memref<3x72x128xbf16, #tpu.memory_space<vmem>>, vector<1x72x128xbf16>
    %8 = vector.shape_cast %7 : vector<1x72x128xbf16> to vector<72x128xbf16>
    %cst_7 = arith.constant dense<0.000000e+00> : vector<16x128xf32>
    %9 = tpu.matmul %6, %8, %cst_7 {dimension_numbers = #tpu.dot_dimension_numbers<[1], [0], [0], [1], [0, 0, 1, 1], [], []>} : vector<16x72xbf16>, vector<72x128xbf16>, vector<16x128xf32> -> vector<16x128xf32>
    %10 = arith.addf %5, %9 : vector<16x128xf32>
    %11 = vector.extract_strided_slice %1 {offsets = [2, 0], sizes = [16, 72], strides = [1, 1]} : vector<18x72xbf16> to vector<16x72xbf16>
    %c2 = arith.constant 2 : index
    %c0_8 = arith.constant 0 : index
    %c0_9 = arith.constant 0 : index
    %12 = vector.load %arg2[%c2, %c0_8, %c0_9] : memref<3x72x128xbf16, #tpu.memory_space<vmem>>, vector<1x72x128xbf16>
    %13 = vector.shape_cast %12 : vector<1x72x128xbf16> to vector<72x128xbf16>
    %cst_10 = arith.constant dense<0.000000e+00> : vector<16x128xf32>
    %14 = tpu.matmul %11, %13, %cst_10 {dimension_numbers = #tpu.dot_dimension_numbers<[1], [0], [0], [1], [0, 0, 1, 1], [], []>} : vector<16x72xbf16>, vector<72x128xbf16>, vector<16x128xf32> -> vector<16x128xf32>
    %15 = arith.addf %10, %14 : vector<16x128xf32>
    %c0_11 = arith.constant 0 : index
    %c0_12 = arith.constant 0 : index
    %16 = vector.load %arg3[%c0_11, %c0_12] : memref<1x128xf32, #tpu.memory_space<vmem>>, vector<1x128xf32>
    %17 = vector.broadcast %16 : vector<1x128xf32> to vector<16x128xf32>
    %18 = arith.addf %15, %17 : vector<16x128xf32>
    %c0_13 = arith.constant 0 : index
    %c0_14 = arith.constant 0 : index
    %19 = vector.load %arg4[%c0_13, %c0_14] : memref<16x128xf32, #tpu.memory_space<vmem>>, vector<16x128xf32>
    tpu.vector_store %arg4[%c0_13, %c0_14], %18 {strides = array<i32>} : memref<16x128xf32, #tpu.memory_space<vmem>>, vector<16x128xf32>,
    return
  }
  func.func @transform_0(%arg0: i32) -> (i32, i32, i32) {
    %c0_i32 = arith.constant 0 : i32
    %c0_i32_0 = arith.constant 0 : i32
    %c0_i32_1 = arith.constant 0 : i32
    return %arg0, %c0_i32, %c0_i32_0 : i32, i32, i32
  }
  func.func @transform_1(%arg0: i32) -> (i32, i32, i32) {
    %c0_i32 = arith.constant 0 : i32
    %c0_i32_0 = arith.constant 0 : i32
    %c0_i32_1 = arith.constant 0 : i32
    %c0_i32_2 = arith.constant 0 : i32
    return %c0_i32, %c0_i32_0, %c0_i32_1 : i32, i32, i32
  }
  func.func @transform_2(%arg0: i32) -> (i32, i32) {
    %c0_i32 = arith.constant 0 : i32
    %c0_i32_0 = arith.constant 0 : i32
    %c0_i32_1 = arith.constant 0 : i32
    return %c0_i32, %c0_i32_0 : i32, i32
  }
  func.func @transform_3(%arg0: i32) -> (i32, i32) {
    %c0_i32 = arith.constant 0 : i32
    %c0_i32_0 = arith.constant 0 : i32
    return %arg0, %c0_i32 : i32, i32
  }
}

</mosaic_0001>

<llo_original>
// kernel: tpu_custom_call.1
$region0: #{tpu_custom_call.1}
  #allocation0 [shape = 'u32[]', space=smem, size = 0x4, offset = 0x4, fixed_abs, tag = 'smem constant byte address 0x4 - core index']
  #allocation1 [shape = 'u32[72,128]{1,0:T(1,128)}', space=vmem, size = 0x9000, scoped, tag = 'internal scratch']
  %s0 = inlined_call_operand.vmem [shape: bf16[2,18,72], index: 0, kind: input, shape index: {}]
  %s1 = inlined_call_operand.hbm [shape: bf16[3,72,128], index: 1, kind: input, shape index: {}]
  %s2 = inlined_call_operand.vmem [shape: f32[1,128], index: 2, kind: input, shape index: {}]
  %s3 = inlined_call_operand.hbm [shape: f32[32,128], index: 3, kind: output, shape index: {}]
  %s4 = sld [smem:[#allocation0]]
  $region49: #{tpu_custom_call.1} parent=0
    _
  %s6 = ssub.s32 1, %s4
  %s7 = scalar_select 0, %s6, %s4
  $region1: #{tpu_custom_call.1} parent=0
    #allocation2 [shape = 'u8[55296]{0}', space=vmem, size = 0xd800, scoped, tag = 'input window, operand 1, single buffered']
    #allocation3 [shape = 's32[2]{0}', space=sflag, size = 0x8, scoped, tag = 'scoped memory for tpu_custom_call.1']
    #allocation4 [shape = 's32[2]{0}', space=sflag, size = 0x8, scoped, tag = 'scoped memory for tpu_custom_call.1']
    #allocation5 [shape = 'u8[16384]{0}', space=vmem, size = 0x4000, scoped, tag = 'output window, operand 0']
    %8 = vsyncpa [#allocation3], 0
    %9 = vsyncpa [#allocation4], 0
    %s10 = scalar_lea.sflag [#allocation4], 1
    %11 = vsyncpa %s10, 0
    loop: start=0, step=1, limit=4
    $region2: #{tpu_custom_call.1} parent=1 // loop_pre_header
      _
    $region3: #{tpu_custom_call.1} parent=1 // loop_header
      %s13 = sphi 0, %s17
      %p14 = scmp.ge.s32.totalorder %s13, 4
      %s23 = sphi 0, %s25
      %s26 = sphi 0, %s23
      %s27 = sphi 0, %s26
      %s43 = sphi 0, %s27
      %s47 = sphi 0, %s47
      %s49 = sphi 0, %s47
      %s50 = sphi 0, %s49
      %s64 = sphi 0, %s50
      %s68 = sphi 0, %s68
      %s70 = sphi 0, %s68
      %s71 = sphi 0, %s70
      %s85 = sphi 0, %s71
      %s91 = sphi 0, %s93
      %s94 = sphi 0, %s91
      %s95 = sphi 0, %s94
      %s111 = sphi 0, %s95
    $region4: #{tpu_custom_call.1} parent=1 // loop_header_branch
      %16 = sbr.rel (%p14) target = $region8
    $region5: #{tpu_custom_call.1} parent=1 // loop_body
      %s18 = ssub.s32 %s13, 1
      %s19 = ssub.s32 %s13, 2
      %s20 = sadd.s32 %s13, 1
      %s21 = ssub.s32 %s13, %s20
      %p22 = scmp.eq.s32.totalorder %s21, 0
      %s24 = sadd.s32 %s23, 1
      %s25 = scalar_select %p22, %s23, %s24
      %p28 = pneg %p22
      %p29 = scmp.eq.s32.totalorder %s13, 1
      %p30 = por %p28, %p29
      %p31 = scmp.ne.s32.totalorder %s23, %s26
      %p32 = scmp.eq.s32.totalorder %s13, 0
      %p33 = por %p31, %p32
      %p34 = scmp.ne.s32.totalorder %s23, %s26
      %p35 = scmp.eq.s32.totalorder %s18, 1
      %p36 = por %p34, %p35
      %p37 = scmp.ne.s32.totalorder %s26, %s27
      %p38 = scmp.eq.s32.totalorder %s18, 0
      %p39 = por %p37, %p38
      %p40 = scmp.ne.s32.totalorder %s26, %s27
      %p41 = scmp.eq.s32.totalorder %s19, 1
      %p42 = por %p40, %p41
      %p44 = scmp.ne.s32.totalorder %s27, %s43
      %p45 = scmp.eq.s32.totalorder %s19, 0
      %p46 = por %p44, %p45
      %s48 = sadd.s32 %s47, 1
      %p51 = scmp.eq.s32.totalorder %s13, 1
      %p52 = scmp.ne.s32.totalorder %s47, %s49
      %p53 = scmp.eq.s32.totalorder %s13, 0
      %p54 = por %p52, %p53
      %p55 = scmp.ne.s32.totalorder %s47, %s49
      %p56 = scmp.eq.s32.totalorder %s18, 1
      %p57 = por %p55, %p56
      %p58 = scmp.ne.s32.totalorder %s49, %s50
      %p59 = scmp.eq.s32.totalorder %s18, 0
      %p60 = por %p58, %p59
      %p61 = scmp.ne.s32.totalorder %s49, %s50
      %p62 = scmp.eq.s32.totalorder %s19, 1
      %p63 = por %p61, %p62
      %p65 = scmp.ne.s32.totalorder %s50, %s64
      %p66 = scmp.eq.s32.totalorder %s19, 0
      %p67 = por %p65, %p66
      %s69 = sadd.s32 %s68, 1
      %p72 = scmp.eq.s32.totalorder %s13, 1
      %p73 = scmp.ne.s32.totalorder %s68, %s70
      %p74 = scmp.eq.s32.totalorder %s13, 0
      %p75 = por %p73, %p74
      %p76 = scmp.ne.s32.totalorder %s68, %s70
      %p77 = scmp.eq.s32.totalorder %s18, 1
      %p78 = por %p76, %p77
      %p79 = scmp.ne.s32.totalorder %s70, %s71
      %p80 = scmp.eq.s32.totalorder %s18, 0
      %p81 = por %p79, %p80
      %p82 = scmp.ne.s32.totalorder %s70, %s71
      %p83 = scmp.eq.s32.totalorder %s19, 1
      %p84 = por %p82, %p83
      %p86 = scmp.ne.s32.totalorder %s71, %s85
      %p87 = scmp.eq.s32.totalorder %s19, 0
      %p88 = por %p86, %p87
      %s89 = ssub.s32 %s13, %s20
      %p90 = scmp.eq.s32.totalorder %s89, 0
      %s92 = sadd.s32 %s91, 1
      %s93 = scalar_select %p90, %s91, %s92
      %p96 = pneg %p90
      %p97 = scmp.eq.s32.totalorder %s13, 1
      %p98 = por %p96, %p97
      %p99 = scmp.ne.s32.totalorder %s91, %s94
      %p100 = scmp.eq.s32.totalorder %s13, 0
      %p101 = por %p99, %p100
      %p102 = scmp.ne.s32.totalorder %s91, %s94
      %p103 = scmp.eq.s32.totalorder %s18, 1
      %p104 = por %p102, %p103
      %p105 = scmp.ne.s32.totalorder %s94, %s95
      %p106 = scmp.eq.s32.totalorder %s18, 0
      %p107 = por %p105, %p106
      %p108 = scmp.ne.s32.totalorder %s94, %s95
      %p109 = scmp.eq.s32.totalorder %s19, 1
      %p110 = por %p108, %p109
      %p112 = scmp.ne.s32.totalorder %s95, %s111
      %p113 = scmp.eq.s32.totalorder %s19, 0
      %p114 = por %p112, %p113
      %p115 = scmp.le.s32.totalorder 1, %s13
      %p116 = scmp.lt.s32.totalorder %s13, 3
      %p117 = pnand %p115, %p116
      %p118 = pneg %p117
      // Predicated region
      $region9: #{tpu_custom_call.1} parent=5 // pred_check
        _
      $region10: #{tpu_custom_call.1} parent=5 // pred_check_branch
        %120 = sbr.rel (%p117) target = $region12
      $region11: #{tpu_custom_call.1} parent=5 // pred_region
        %s121 = ssub.s32 %s13, 1
        // Predicated region
        $region13: #{tpu_custom_call.1} parent=11 // pred_check
          %p122 = pneg %p60
        $region14: #{tpu_custom_call.1} parent=11 // pred_check_branch
          %124 = sbr.rel (%p122) target = $region16
        $region15: #{tpu_custom_call.1} parent=11 // pred_region
          %126 = vsyncadd [#allocation3], 0
          %s127 = sshll.u32 %s1, 4
          %s128 = int_to_ptr.hbm [resolvable:$true] %s127
          %s129 = sshll.u32 [#allocation2], 4
          %s130 = int_to_ptr.vmem [resolvable:$true] %s129
          %135 = dma.hbm_to_vmem [thread:$0]  %s128, 1728, %s130, [#allocation3], 64, 64, 4
        $region16: #{tpu_custom_call.1} parent=11 // pred_fallthru
          _
        // Predicated region
        $region17: #{tpu_custom_call.1} parent=11 // pred_check
          %p136 = pneg %p81
        $region18: #{tpu_custom_call.1} parent=11 // pred_check_branch
          %138 = sbr.rel (%p136) target = $region20
        $region19: #{tpu_custom_call.1} parent=11 // pred_region
          _
        $region20: #{tpu_custom_call.1} parent=11 // pred_fallthru
          _
      $region12: #{tpu_custom_call.1} parent=5 // pred_fallthru
        _
      %p139 = scmp.lt.s32.totalorder %s13, 2
      // Predicated region
      $region21: #{tpu_custom_call.1} parent=5 // pred_check
        %p140 = pneg %p139
      $region22: #{tpu_custom_call.1} parent=5 // pred_check_branch
        %142 = sbr.rel (%p140) target = $region24
      $region23: #{tpu_custom_call.1} parent=5 // pred_region
        // Predicated region
        $region25: #{tpu_custom_call.1} parent=23 // pred_check
          %p143 = pneg %p33
        $region26: #{tpu_custom_call.1} parent=23 // pred_check_branch
          %145 = sbr.rel (%p143) target = $region28
        $region27: #{tpu_custom_call.1} parent=23 // pred_region
          %p146 = scmp.lt.s32.totalorder %s13, 1
          %s147 = scalar_select %p146, %s13, 1
          %s148 = smul.addr %s147, 3
          %s149 = smul.addr %s148, 4
          %s150 = scalar_lea.vmem %s0, %s149
        $region28: #{tpu_custom_call.1} parent=23 // pred_fallthru
          _
      $region24: #{tpu_custom_call.1} parent=5 // pred_fallthru
        _
      %p151 = scmp.le.s32.totalorder 1, %s13
      %p152 = scmp.lt.s32.totalorder %s13, 3
      %p153 = pnand %p151, %p152
      %p154 = pneg %p153
      // Predicated region
      $region29: #{tpu_custom_call.1} parent=5 // pred_check
        _
      $region30: #{tpu_custom_call.1} parent=5 // pred_check_branch
        %156 = sbr.rel (%p153) target = $region32
      $region31: #{tpu_custom_call.1} parent=5 // pred_region
        %s157 = ssub.s32 %s13, 1
        // Predicated region
        $region33: #{tpu_custom_call.1} parent=31 // pred_check
          %p158 = pneg %p60
        $region34: #{tpu_custom_call.1} parent=31 // pred_check_branch
          %160 = sbr.rel (%p158) target = $region36
        $region35: #{tpu_custom_call.1} parent=31 // pred_region
          %162 = dma.done [#allocation3], 1728
        $region36: #{tpu_custom_call.1} parent=31 // pred_fallthru
          _
        %p163 = scmp.lt.s32.totalorder %s18, 1
        %s164 = scalar_select %p163, %s18, 1
        %s165 = smul.addr %s164, 3
        %s166 = smul.addr %s165, 4
        %s167 = scalar_lea.vmem %s0, %s166
        %p168 = pneg %p39
        %p169 = pneg %p36
        %p170 = pneg %p60
        %p171 = pneg %p57
        %p172 = pneg %p81
        %p173 = pneg %p78
        %p174 = pneg %p107
        %p175 = pneg %p104
        %s176 = sand.u32 %s94, 1
        %s177 = scalar_lea.sflag [#allocation4], %s176
        %s178 = sand.u32 %s94, 1
        %s179 = smul.addr %s178, 16
        %s180 = scalar_lea.vmem [#allocation5], %s179
        %p181 = scmp.lt.s32.totalorder %s18, 1
        %s182 = scalar_select %p181, %s18, 1
        %s183 = smul.addr %s182, 3
        %s184 = smul.addr %s183, 4
        %s185 = scalar_lea.vmem %s0, %s184
        %s186 = smul.u32 2, %s18
        %v188 = vld [vmem:[%s185] sm:$0xf]
        %v189 = vld [vmem:[%s185 + $0x4] sm:$0xf]
        %v190 = vld [vmem:[%s185 + $0x8] sm:$0x1]
        %v191 = vld [vmem:[#allocation2] sm:$0xf]
        %v192 = vld [vmem:[#allocation2 + $0x4] sm:$0xf]
        %v193 = vld [vmem:[#allocation2 + $0x8] sm:$0xf]
        %v194 = vld [vmem:[#allocation2 + $0xc] sm:$0xf]
        %v195 = vld [vmem:[#allocation2 + $0x10] sm:$0xf]
        %v196 = vld [vmem:[#allocation2 + $0x14] sm:$0xf]
        %v197 = vld [vmem:[#allocation2 + $0x18] sm:$0xf]
        %v198 = vld [vmem:[#allocation2 + $0x1c] sm:$0xf]
        %v199 = vld [vmem:[#allocation2 + $0x20] sm:$0xf]
        %s200 = scalar_lea.vmem [#allocation2], 36
        %v201 = vld [vmem:[%s200] sm:$0xf]
        %v202 = vld [vmem:[%s200 + $0x4] sm:$0xf]
        %v203 = vld [vmem:[%s200 + $0x8] sm:$0xf]
        %v204 = vld [vmem:[%s200 + $0xc] sm:$0xf]
        %v205 = vld [vmem:[%s200 + $0x10] sm:$0xf]
        %v206 = vld [vmem:[%s200 + $0x14] sm:$0xf]
        %v207 = vld [vmem:[%s200 + $0x18] sm:$0xf]
        %v208 = vld [vmem:[%s200 + $0x1c] sm:$0xf]
        %v209 = vld [vmem:[%s200 + $0x20] sm:$0xf]
        %v213 = vunpack.c.l.b16 %v188
        %v214 = vunpack.c.l.b16 %v189
        %v215 = vunpack.c.l.b16 %v190
        %v216 = vpack.c.b16 %v214, %v213
        %v217 = vpack.c.b16 %v215, %v215
        %vm218 = vsmask.f32 7424
        %v220 = vshrl.u32 %v216, 16
        %v222 = vshll.u32 %v216, 16
        %v224 = vrot.slane %v222, 1
        %v225 = vor.u32 %v220, %v224
        %v227 = vshll.u32 %v217, 16
        %v229 = vrot.slane %v227, 1
        %v230 = vsel %vm218, %v225, %v229
        %v240 = vunpack.c.l.b16 %v201
        %v241 = vunpack.c.l.b16 %v202
        %v242 = vunpack.c.l.b16 %v203
        %v243 = vunpack.c.l.b16 %v204
        %v244 = vunpack.c.l.b16 %v205
        %v245 = vunpack.c.l.b16 %v206
        %v246 = vunpack.c.l.b16 %v207
        %v247 = vunpack.c.l.b16 %v208
        %v248 = vunpack.c.l.b16 %v209
        %v249 = vpack.c.b16 %v241, %v240
        %v250 = vpack.c.b16 %v243, %v242
        %v251 = vpack.c.b16 %v245, %v244
        %v252 = vpack.c.b16 %v247, %v246
        %v253 = vpack.c.b16 %v248, %v248
        %vm258 = vcmask 588800
        %v260 = vsel %vm258, %v230, 0
        %vm262 = vcmask 1043456
        %v264 = vsel %vm262, %v253, 0
        %266 = vmatpush.bf16.msra.mxu0 0
        %267 = vmatpush.bf16.msra.mxu0 0
        %268 = vmatpush.bf16.msra.mxu0 0
        %269 = vmatpush.bf16.msra.mxu0 %v264
        %270 = vmatpush.bf16.msra.mxu0 %v252
        %271 = vmatpush.bf16.msra.mxu0 %v251
        %272 = vmatpush.bf16.msra.mxu0 %v250
        %273 = vmatpush.bf16.msra.mxu0 %v249
        %274 = vmatmul.bf16.gmra.mxu0 %v260
        %v275 = vpop.f32.mrf.mxu0
        %v276 = vadd.f32 0.0, %v275
        %v277 = vpop.f32.mrf.mxu0
        %v278 = vadd.f32 0.0, %v277
        %279 = vdwg.mxu0
        %v289 = vunpack.c.l.b16 %v191
        %v290 = vunpack.c.l.b16 %v192
        %v291 = vunpack.c.l.b16 %v193
        %v292 = vunpack.c.l.b16 %v194
        %v293 = vunpack.c.l.b16 %v195
        %v294 = vunpack.c.l.b16 %v196
        %v295 = vunpack.c.l.b16 %v197
        %v296 = vunpack.c.l.b16 %v198
        %v297 = vunpack.c.l.b16 %v199
        %v298 = vpack.c.b16 %v290, %v289
        %v299 = vpack.c.b16 %v292, %v291
        %v300 = vpack.c.b16 %v294, %v293
        %v301 = vpack.c.b16 %v296, %v295
        %v302 = vpack.c.b16 %v297, %v297
        %v307 = vsel %vm258, %v216, 0
        %v310 = vsel %vm262, %v302, 0
        %312 = vmatpush.bf16.msra.mxu0 0
        %313 = vmatpush.bf16.msra.mxu0 0
        %314 = vmatpush.bf16.msra.mxu0 0
        %315 = vmatpush.bf16.msra.mxu0 %v310
        %316 = vmatpush.bf16.msra.mxu0 %v301
        %317 = vmatpush.bf16.msra.mxu0 %v300
        %318 = vmatpush.bf16.msra.mxu0 %v299
        %319 = vmatpush.bf16.msra.mxu0 %v298
        %320 = vmatmul.bf16.gmra.mxu0 %v307
        %v321 = vpop.f32.mrf.mxu0
        %v322 = vadd.f32 %v276, %v321
        %v323 = vpop.f32.mrf.mxu0
        %v324 = vadd.f32 %v278, %v323
        %325 = vdwg.mxu0
        %s326 = scalar_lea.vmem [#allocation2], 72
        %v327 = vld [vmem:[%s326] sm:$0xf]
        %v328 = vld [vmem:[%s326 + $0x4] sm:$0xf]
        %v329 = vld [vmem:[%s326 + $0x8] sm:$0xf]
        %v330 = vld [vmem:[%s326 + $0xc] sm:$0xf]
        %v331 = vld [vmem:[%s326 + $0x10] sm:$0xf]
        %v332 = vld [vmem:[%s326 + $0x14] sm:$0xf]
        %v333 = vld [vmem:[%s326 + $0x18] sm:$0xf]
        %v334 = vld [vmem:[%s326 + $0x1c] sm:$0xf]
        %v335 = vld [vmem:[%s326 + $0x20] sm:$0xf]
        %vm336 = vcmask 1046528
        %v337 = vrot.slane %v216, 1
        %v338 = vrot.slane %v217, 1
        %v339 = vsel %vm336, %v337, %v338
        %v349 = vunpack.c.l.b16 %v327
        %v350 = vunpack.c.l.b16 %v328
        %v351 = vunpack.c.l.b16 %v329
        %v352 = vunpack.c.l.b16 %v330
        %v353 = vunpack.c.l.b16 %v331
        %v354 = vunpack.c.l.b16 %v332
        %v355 = vunpack.c.l.b16 %v333
        %v356 = vunpack.c.l.b16 %v334
        %v357 = vunpack.c.l.b16 %v335
        %v358 = vpack.c.b16 %v350, %v349
        %v359 = vpack.c.b16 %v352, %v351
        %v360 = vpack.c.b16 %v354, %v353
        %v361 = vpack.c.b16 %v356, %v355
        %v362 = vpack.c.b16 %v357, %v357
        %v368 = vsel %vm258, %v339, 0
        %v371 = vsel %vm262, %v362, 0
        %373 = vmatpush.bf16.msra.mxu0 0
        %374 = vmatpush.bf16.msra.mxu0 0
        %375 = vmatpush.bf16.msra.mxu0 0
        %376 = vmatpush.bf16.msra.mxu0 %v371
        %377 = vmatpush.bf16.msra.mxu0 %v361
        %378 = vmatpush.bf16.msra.mxu0 %v360
        %379 = vmatpush.bf16.msra.mxu0 %v359
        %380 = vmatpush.bf16.msra.mxu0 %v358
        %381 = vmatmul.bf16.gmra.mxu0 %v368
        %v382 = vpop.f32.mrf.mxu0
        %v383 = vadd.f32 0.0, %v382
        %v384 = vpop.f32.mrf.mxu0
        %v385 = vadd.f32 0.0, %v384
        %386 = vdwg.mxu0
        %v387 = vadd.f32 %v322, %v383
        %v388 = vadd.f32 %v324, %v385
        %v389 = vld [vmem:[%s2] sm:$0x1]
        %v391 = vperm.slane %v389, 0
        %v393 = vadd.f32 %v387, %v391
        %v394 = vadd.f32 %v388, %v391
        %395 = vst [vmem:[%s180] sm:$0xff] %v393
        %396 = vst [vmem:[%s180 + $0x8] sm:$0xff] %v394
        %s397 = sand.u32 %s94, 1
        %s398 = scalar_lea.sflag [#allocation4], %s397
        %s399 = sand.u32 %s94, 1
        %s400 = smul.addr %s399, 16
        %s401 = scalar_lea.vmem [#allocation5], %s400
        // Predicated region
        $region37: #{tpu_custom_call.1} parent=31 // pred_check
          %p402 = pneg %p104
        $region38: #{tpu_custom_call.1} parent=31 // pred_check_branch
          %404 = sbr.rel (%p402) target = $region40
        $region39: #{tpu_custom_call.1} parent=31 // pred_region
          %s405 = smul.u32 2, %s18
          %407 = vsyncadd %s398, 0
          %s408 = smul.addr %s405, 8
          %s409 = scalar_lea.hbm %s3, %s408
          %s410 = sshll.u32 %s401, 4
          %s411 = int_to_ptr.vmem [resolvable:$true] %s410
          %s412 = sshll.u32 %s409, 4
          %s413 = int_to_ptr.hbm [resolvable:$true] %s412
          %418 = dma.vmem_to_hbm [thread:$0]  %s411, 256, %s413, %s398, 128, 128, 8
        $region40: #{tpu_custom_call.1} parent=31 // pred_fallthru
          _
      $region32: #{tpu_custom_call.1} parent=5 // pred_fallthru
        _
      %p419 = scmp.le.s32.totalorder 2, %s13
      // Predicated region
      $region41: #{tpu_custom_call.1} parent=5 // pred_check
        %p420 = pneg %p419
      $region42: #{tpu_custom_call.1} parent=5 // pred_check_branch
        %422 = sbr.rel (%p420) target = $region44
      $region43: #{tpu_custom_call.1} parent=5 // pred_region
        %s423 = ssub.s32 %s13, 2
        // Predicated region
        $region45: #{tpu_custom_call.1} parent=43 // pred_check
          %p424 = pneg %p110
        $region46: #{tpu_custom_call.1} parent=43 // pred_check_branch
          %426 = sbr.rel (%p424) target = $region48
        $region47: #{tpu_custom_call.1} parent=43 // pred_region
          %s427 = sand.u32 %s95, 1
          %s428 = scalar_lea.sflag [#allocation4], %s427
          %s429 = sand.u32 %s95, 1
          %s430 = smul.addr %s429, 16
          %s431 = scalar_lea.vmem [#allocation5], %s430
          %433 = dma.done %s428, 256
        $region48: #{tpu_custom_call.1} parent=43 // pred_fallthru
          _
      $region44: #{tpu_custom_call.1} parent=5 // pred_fallthru
        _
    $region6: #{tpu_custom_call.1} parent=1 // loop_footer
      %s17 = sadd.s32 1, %s13
    $region7: #{tpu_custom_call.1} parent=1 // loop_footer_branch
      %12 = sbr.rel target = $region3
    $region8: #{tpu_custom_call.1} parent=1 // loop_exit
      _
    %434 = vsyncpa [#allocation3], 1
    %s435 = scalar_lea.sflag [#allocation3], 1
    %436 = vsyncpa %s435, 1
    %437 = vsyncpa [#allocation4], 1
    %s438 = scalar_lea.sflag [#allocation4], 1
    %439 = vsyncpa %s438, 1

</llo_original>
